<compile_context>
chip_gen: v6e
topology: v6e:2x2x1
jax: 0.10.0
libtpu: 0.0.40
codegen_flags: <defaults>
</compile_context>

<pallas_src>
import jax
import jax.numpy as jnp
from jax.experimental import pallas as pl
from jax.experimental.pallas import tpu as pltpu

_LANE = 128
_SUBLANE = 8
_NEG_BIG = -1e30   # baked into padded action-lane biases -> exp() underflows to 0


def _round_up(x, m):
    return ((x + m - 1) // m) * m


def _choose_batch_tiling(B):
    """Pick (TB, B_pad, num_tiles) for the batch grid axis."""
    num_tiles = max(1, -(-B // 512))          # ceil(B / 512)
    if B >= 256 and num_tiles < 2:
        num_tiles = 2                         # let v7x use both TensorCores
    TB = _round_up(-(-B // num_tiles), _SUBLANE)
    B_pad = num_tiles * TB
    return TB, B_pad, num_tiles


# ---------------------------------------------------------------------------
# Fused kernel: all layers in one body (unrolled at trace time).
# ---------------------------------------------------------------------------
def _make_fused_kernel(n_layers):
    def kernel(x_ref, *refs):
        o_ref = refs[-1]
        h = x_ref[...]                                    # bf16 (TB, S_pad)
        for i in range(n_layers):
            w = refs[2 * i][...]                          # bf16 (K_pad, N_pad)
            b = refs[2 * i + 1][...]                      # f32  (1, N_pad)
            y = jnp.dot(h, w, preferred_element_type=jnp.float32) + b
            if i < n_layers - 1:
                h = jnp.maximum(y, 0.0).astype(jnp.bfloat16)
            else:
                # Padded action lanes already carry bias -1e30 (host-side), so
                # no iota/where masking is needed: exp() gives exactly 0 there.
                y_max = jnp.max(y, axis=1, keepdims=True)
                e = jnp.exp(y - y_max)
                denom = jnp.sum(e, axis=1, keepdims=True)
                # Exact reciprocal (EUP slot, essentially free): rows sum to 1
                # within f32 rounding.
                o_ref[...] = (e * pl.reciprocal(denom, approx=False)).astype(
                    o_ref.dtype)
    return kernel


# ---------------------------------------------------------------------------
# Parameter construction (deterministic, mimicking nn.Linear default init)
# ---------------------------------------------------------------------------
def init_params(key, state_size, action_size, hidden_layer_dims):
    """Returns a list of (W, b) with W of shape (in, out)."""
    dims = [state_size] + list(hidden_layer_dims) + [action_size]
    params = []
    for i in range(len(dims) - 1):
        fan_in, fan_out = dims[i], dims[i + 1]
        key, kw, kb = jax.random.split(key, 3)
        bound = 1.0 / jnp.sqrt(fan_in)
        w = jax.random.uniform(kw, (fan_in, fan_out), jnp.float32, -bound, bound)
        b = jax.random.uniform(kb, (fan_out,), jnp.float32, -bound, bound)
        params.append((w, b))
    return params


# ---------------------------------------------------------------------------
# Forward pass (matches Softmax_Policy_Dense_Layers.forward)
# ---------------------------------------------------------------------------
@jax.jit
def softmax_policy_forward(x, params):
    B, state_size = x.shape
    n = len(params)
    action_size = params[-1][1].shape[0]

    # Input/state dim: only rounded to a sublane multiple (HBM stream stays
    # lean); hidden/action dims padded to 128 lanes (never touch HBM).
    in_dims = [state_size] + [w.shape[1] for w, _ in params[:-1]]
    out_dims = [w.shape[1] for w, _ in params]
    s_pad = _round_up(state_size, _SUBLANE)
    in_pad = [s_pad] + [_round_up(d, _LANE) for d in in_dims[1:]]
    out_pad = [_round_up(d, _LANE) for d in out_dims]

    TB, B_pad, num_tiles = _choose_batch_tiling(B)

    # bf16 activations/weights for the matmuls; bias & softmax stay f32.
    x_p = jnp.pad(x.astype(jnp.float32),
                  ((0, B_pad - B), (0, s_pad - state_size))).astype(jnp.bfloat16)

    padded_inputs = [x_p]
    in_specs = [pl.BlockSpec((TB, s_pad), lambda i: (i, 0))]
    for li, (w, b) in enumerate(params):
        wp = jnp.pad(w.astype(jnp.float32),
                     ((0, in_pad[li] - w.shape[0]),
                      (0, out_pad[li] - w.shape[1]))).astype(jnp.bfloat16)
        # Last layer: padded action lanes get -1e30 bias so they softmax to 0
        # (padded W columns are zero) -> no in-kernel masking needed.
        fill = _NEG_BIG if li == n - 1 else 0.0
        bp = jnp.pad(b.astype(jnp.float32),
                     (0, out_pad[li] - b.shape[0]),
                     constant_values=fill).reshape(1, out_pad[li])
        padded_inputs += [wp, bp]
        # Constant index_maps -> weights/biases resident in VMEM across steps.
        in_specs += [
            pl.BlockSpec((in_pad[li], out_pad[li]), lambda i: (0, 0)),
            pl.BlockSpec((1, out_pad[li]), lambda i: (0, 0)),
        ]

    out_last = out_pad[-1]

    # Advisory cost estimate on TRUE dims (not padded ones).
    dims = [state_size] + list(in_dims[1:]) + [action_size]
    flops = 2 * B * sum(dims[i] * dims[i + 1] for i in range(len(dims) - 1))
    bytes_accessed = (
        2 * B * state_size                       # bf16 x read
        + 4 * B * action_size                    # f32 probs written (useful part)
        + sum(2 * dims[i] * dims[i + 1] + 4 * dims[i + 1]
              for i in range(len(dims) - 1)))    # bf16 W + f32 b

    out_padded = pl.pallas_call(
        _make_fused_kernel(n),
        out_shape=jax.ShapeDtypeStruct((B_pad, out_last), jnp.float32),
        grid=(num_tiles,),
        in_specs=in_specs,
        out_specs=pl.BlockSpec((TB, out_last), lambda i: (i, 0)),
        compiler_params=pltpu.CompilerParams(
            dimension_semantics=("parallel",)),
        cost_estimate=pl.CostEstimate(
            flops=flops,
            transcendentals=B * action_size,
            bytes_accessed=bytes_accessed),
    )(*padded_inputs)

    return out_padded[:B, :action_size]


# ---------------------------------------------------------------------------
# Pure-JAX (f32) reference for sanity checking
# ---------------------------------------------------------------------------
def reference_forward(x, params):
    n = len(params)
    for i, (w, b) in enumerate(params):
        x = x @ w + b
        if i < n - 1:
            x = jnp.maximum(x, 0.0)
        else:
            x = jax.nn.softmax(x, axis=1)
    return x


if __name__ == "__main__":
    state_size = 16
    action_size = 8
    hidden_layer_dims = [32, 32]
    batch = 2

    key = jax.random.PRNGKey(0)
    key, k_x = jax.random.split(key)
    x = jax.random.normal(k_x, (batch, state_size), dtype=jnp.float32)

    params = init_params(key, state_size, action_size, hidden_layer_dims)

    probs = jax.block_until_ready(softmax_policy_forward(x, params))
    ref = reference_forward(x, params)
    assert probs.shape == (batch, action_size)
    # Exact reciprocal -> rows sum to 1 within f32 rounding.
    assert jnp.allclose(jnp.sum(probs, axis=1), 1.0, atol=1e-3)
    # bf16 matmuls -> slightly loosened tolerance vs the pure-f32 reference.
    assert jnp.allclose(probs, ref, atol=3e-2)

    # No-hidden-layer branch: softmax(fc1(x)).
    params0 = init_params(key, state_size, action_size, [])
    probs0 = jax.block_until_ready(softmax_policy_forward(x, params0))
    ref0 = reference_forward(x, params0)
    assert probs0.shape == (batch, action_size)
    assert jnp.allclose(jnp.sum(probs0, axis=1), 1.0, atol=1e-3)
    assert jnp.allclose(probs0, ref0, atol=3e-2)

    # Multi-tile grid path (batch padding + 2 grid steps, v7x dual-TC shape).
    key, k_big = jax.random.split(key)
    x_big = jax.random.normal(k_big, (260, state_size), dtype=jnp.float32)
    probs_big = jax.block_until_ready(softmax_policy_forward(x_big, params))
    ref_big = reference_forward(x_big, params)
    assert probs_big.shape == (260, action_size)
    assert jnp.allclose(jnp.sum(probs_big, axis=1), 1.0, atol=1e-3)
    assert jnp.allclose(probs_big, ref_big, atol=3e-2)

    print("KERNEL_OK")
</pallas_src>

<mosaic_0001>
module attributes {stable_mosaic.version = 11 : i64} {
  func.func @kernel(%arg0: i32, %arg1: memref<8x16xbf16, #tpu.memory_space<vmem>>, %arg2: memref<16x128xbf16, #tpu.memory_space<vmem>>, %arg3: memref<1x128xf32, #tpu.memory_space<vmem>>, %arg4: memref<128x128xbf16, #tpu.memory_space<vmem>>, %arg5: memref<1x128xf32, #tpu.memory_space<vmem>>, %arg6: memref<128x128xbf16, #tpu.memory_space<vmem>>, %arg7: memref<1x128xf32, #tpu.memory_space<vmem>>, %arg8: memref<8x128xf32, #tpu.memory_space<vmem>>) attributes {dimension_semantics = [#tpu.dimension_semantics<parallel>], iteration_bounds = array<i64: 1>, scalar_prefetch = 0 : i64, scratch_operands = 0 : i64, tpu.core_type = #tpu.core_type<tc>, window_params = [{transform_indices = @transform_0, window_bounds = array<i64: 8, 16>}, {pipeline_mode = #tpu.pipeline_mode<synchronous>, transform_indices = @transform_1, window_bounds = array<i64: 16, 128>}, {pipeline_mode = #tpu.pipeline_mode<synchronous>, transform_indices = @transform_2, window_bounds = array<i64: 1, 128>}, {pipeline_mode = #tpu.pipeline_mode<synchronous>, transform_indices = @transform_3, window_bounds = array<i64: 128, 128>}, {pipeline_mode = #tpu.pipeline_mode<synchronous>, transform_indices = @transform_4, window_bounds = array<i64: 1, 128>}, {pipeline_mode = #tpu.pipeline_mode<synchronous>, transform_indices = @transform_5, window_bounds = array<i64: 128, 128>}, {pipeline_mode = #tpu.pipeline_mode<synchronous>, transform_indices = @transform_6, window_bounds = array<i64: 1, 128>}, {transform_indices = @transform_7, window_bounds = array<i64: 8, 128>}]} {
    %c0 = arith.constant 0 : index
    %c0_0 = arith.constant 0 : index
    %0 = vector.load %arg1[%c0, %c0_0] : memref<8x16xbf16, #tpu.memory_space<vmem>>, vector<8x16xbf16>
    %c0_1 = arith.constant 0 : index
    %c0_2 = arith.constant 0 : index
    %1 = vector.load %arg2[%c0_1, %c0_2] : memref<16x128xbf16, #tpu.memory_space<vmem>>, vector<16x128xbf16>
    %c0_3 = arith.constant 0 : index
    %c0_4 = arith.constant 0 : index
    %2 = vector.load %arg3[%c0_3, %c0_4] : memref<1x128xf32, #tpu.memory_space<vmem>>, vector<1x128xf32>
    %cst = arith.constant dense<0.000000e+00> : vector<8x128xf32>
    %3 = tpu.matmul %0, %1, %cst {dimension_numbers = #tpu.dot_dimension_numbers<[1], [0], [0], [1], [0, 0, 1, 1], [], []>} : vector<8x16xbf16>, vector<16x128xbf16>, vector<8x128xf32> -> vector<8x128xf32>
    %4 = vector.broadcast %2 : vector<1x128xf32> to vector<8x128xf32>
    %5 = arith.addf %3, %4 : vector<8x128xf32>
    %cst_5 = arith.constant 0.000000e+00 : f32
    %6 = vector.broadcast %cst_5 : f32 to vector<8x128xf32>
    %7 = arith.maximumf %5, %6 : vector<8x128xf32>
    %8 = arith.truncf %7 : vector<8x128xf32> to vector<8x128xbf16>
    %c0_6 = arith.constant 0 : index
    %c0_7 = arith.constant 0 : index
    %9 = vector.load %arg4[%c0_6, %c0_7] : memref<128x128xbf16, #tpu.memory_space<vmem>>, vector<128x128xbf16>
    %c0_8 = arith.constant 0 : index
    %c0_9 = arith.constant 0 : index
    %10 = vector.load %arg5[%c0_8, %c0_9] : memref<1x128xf32, #tpu.memory_space<vmem>>, vector<1x128xf32>
    %cst_10 = arith.constant dense<0.000000e+00> : vector<8x128xf32>
    %11 = tpu.matmul %8, %9, %cst_10 {dimension_numbers = #tpu.dot_dimension_numbers<[1], [0], [0], [1], [0, 0, 1, 1], [], []>} : vector<8x128xbf16>, vector<128x128xbf16>, vector<8x128xf32> -> vector<8x128xf32>
    %12 = vector.broadcast %10 : vector<1x128xf32> to vector<8x128xf32>
    %13 = arith.addf %11, %12 : vector<8x128xf32>
    %cst_11 = arith.constant 0.000000e+00 : f32
    %14 = vector.broadcast %cst_11 : f32 to vector<8x128xf32>
    %15 = arith.maximumf %13, %14 : vector<8x128xf32>
    %16 = arith.truncf %15 : vector<8x128xf32> to vector<8x128xbf16>
    %c0_12 = arith.constant 0 : index
    %c0_13 = arith.constant 0 : index
    %17 = vector.load %arg6[%c0_12, %c0_13] : memref<128x128xbf16, #tpu.memory_space<vmem>>, vector<128x128xbf16>
    %c0_14 = arith.constant 0 : index
    %c0_15 = arith.constant 0 : index
    %18 = vector.load %arg7[%c0_14, %c0_15] : memref<1x128xf32, #tpu.memory_space<vmem>>, vector<1x128xf32>
    %cst_16 = arith.constant dense<0.000000e+00> : vector<8x128xf32>
    %19 = tpu.matmul %16, %17, %cst_16 {dimension_numbers = #tpu.dot_dimension_numbers<[1], [0], [0], [1], [0, 0, 1, 1], [], []>} : vector<8x128xbf16>, vector<128x128xbf16>, vector<8x128xf32> -> vector<8x128xf32>
    %20 = vector.broadcast %18 : vector<1x128xf32> to vector<8x128xf32>
    %21 = arith.addf %19, %20 : vector<8x128xf32>
    %cst_17 = arith.constant dense<0xFF800000> : vector<8xf32>
    %22 = vector.multi_reduction <maximumf>, %21, %cst_17 [1] : vector<8x128xf32> to vector<8xf32>
    %23 = vector.shape_cast %22 : vector<8xf32> to vector<8x1xf32>
    %24 = vector.broadcast %23 : vector<8x1xf32> to vector<8x128xf32>
    %25 = arith.subf %21, %24 : vector<8x128xf32>
    %26 = math.exp %25 : vector<8x128xf32>
    %cst_18 = arith.constant dense<0.000000e+00> : vector<8xf32>
    %27 = vector.multi_reduction <add>, %26, %cst_18 [1] : vector<8x128xf32> to vector<8xf32>
    %28 = vector.shape_cast %27 : vector<8xf32> to vector<8x1xf32>
    %29 = tpu.reciprocal %28 : vector<8x1xf32> -> vector<8x1xf32>
    %30 = vector.broadcast %29 : vector<8x1xf32> to vector<8x128xf32>
    %31 = arith.mulf %26, %30 : vector<8x128xf32>
    %c0_19 = arith.constant 0 : index
    %c0_20 = arith.constant 0 : index
    %32 = vector.load %arg8[%c0_19, %c0_20] : memref<8x128xf32, #tpu.memory_space<vmem>>, vector<8x128xf32>
    tpu.vector_store %arg8[%c0_19, %c0_20], %31 {strides = array<i32>} : memref<8x128xf32, #tpu.memory_space<vmem>>, vector<8x128xf32>,
    return
  }
  func.func @transform_0(%arg0: i32) -> (i32, i32) {
    %c0_i32 = arith.constant 0 : i32
    %c0_i32_0 = arith.constant 0 : i32
    return %arg0, %c0_i32 : i32, i32
  }
  func.func @transform_1(%arg0: i32) -> (i32, i32) {
    %c0_i32 = arith.constant 0 : i32
    %c0_i32_0 = arith.constant 0 : i32
    %c0_i32_1 = arith.constant 0 : i32
    return %c0_i32, %c0_i32_0 : i32, i32
  }
  func.func @transform_2(%arg0: i32) -> (i32, i32) {
    %c0_i32 = arith.constant 0 : i32
    %c0_i32_0 = arith.constant 0 : i32
    %c0_i32_1 = arith.constant 0 : i32
    return %c0_i32, %c0_i32_0 : i32, i32
  }
  func.func @transform_3(%arg0: i32) -> (i32, i32) {
    %c0_i32 = arith.constant 0 : i32
    %c0_i32_0 = arith.constant 0 : i32
    %c0_i32_1 = arith.constant 0 : i32
    return %c0_i32, %c0_i32_0 : i32, i32
  }
  func.func @transform_4(%arg0: i32) -> (i32, i32) {
    %c0_i32 = arith.constant 0 : i32
    %c0_i32_0 = arith.constant 0 : i32
    %c0_i32_1 = arith.constant 0 : i32
    return %c0_i32, %c0_i32_0 : i32, i32
  }
  func.func @transform_5(%arg0: i32) -> (i32, i32) {
    %c0_i32 = arith.constant 0 : i32
    %c0_i32_0 = arith.constant 0 : i32
    %c0_i32_1 = arith.constant 0 : i32
    return %c0_i32, %c0_i32_0 : i32, i32
  }
  func.func @transform_6(%arg0: i32) -> (i32, i32) {
    %c0_i32 = arith.constant 0 : i32
    %c0_i32_0 = arith.constant 0 : i32
    %c0_i32_1 = arith.constant 0 : i32
    return %c0_i32, %c0_i32_0 : i32, i32
  }
  func.func @transform_7(%arg0: i32) -> (i32, i32) {
    %c0_i32 = arith.constant 0 : i32
    %c0_i32_0 = arith.constant 0 : i32
    return %arg0, %c0_i32 : i32, i32
  }
}

</mosaic_0001>

<llo_original>
// kernel: softmax_policy_forward.1
$region0: #{softmax_policy_forward.1}
  #allocation0 [shape = 'u32[]', space=smem, size = 0x4, offset = 0x4, fixed_abs, tag = 'smem constant byte address 0x4 - core index']
  #allocation1 [shape = 'u32[144,128]{1,0:T(1,128)}', space=vmem, size = 0x12000, scoped, tag = 'internal scratch']
  %s0 = inlined_call_operand.vmem [shape: bf16[8,16], index: 0, kind: input, shape index: {}]
  %s1 = inlined_call_operand.vmem [shape: bf16[16,128], index: 1, kind: input, shape index: {}]
  %s2 = inlined_call_operand.vmem [shape: f32[1,128], index: 2, kind: input, shape index: {}]
  %s3 = inlined_call_operand.vmem [shape: bf16[128,128], index: 3, kind: input, shape index: {}]
  %s4 = inlined_call_operand.vmem [shape: f32[1,128], index: 4, kind: input, shape index: {}]
  %s5 = inlined_call_operand.vmem [shape: bf16[128,128], index: 5, kind: input, shape index: {}]
  %s6 = inlined_call_operand.vmem [shape: f32[1,128], index: 6, kind: input, shape index: {}]
  %s7 = inlined_call_operand.vmem [shape: f32[8,128], index: 7, kind: output, shape index: {}]
  %s8 = sld [smem:[#allocation0]]
  $region38: #{softmax_policy_forward.1} parent=0
    _
  %s10 = ssub.s32 1, %s8
  %s11 = scalar_select 0, %s10, %s8
  // Predicated region
  $region2: #{softmax_policy_forward.1} parent=0 // pred_check
    _
  $region3: #{softmax_policy_forward.1} parent=0 // pred_check_branch
    %13 = sbr.rel (0) target = $region5
  $region4: #{softmax_policy_forward.1} parent=0 // pred_region
    _
  $region5: #{softmax_policy_forward.1} parent=0 // pred_fallthru
    _
  // Predicated region
  $region6: #{softmax_policy_forward.1} parent=0 // pred_check
    _
  $region7: #{softmax_policy_forward.1} parent=0 // pred_check_branch
    %15 = sbr.rel (0) target = $region9
  $region8: #{softmax_policy_forward.1} parent=0 // pred_region
    _
  $region9: #{softmax_policy_forward.1} parent=0 // pred_fallthru
    _
  // Predicated region
  $region10: #{softmax_policy_forward.1} parent=0 // pred_check
    _
  $region11: #{softmax_policy_forward.1} parent=0 // pred_check_branch
    %17 = sbr.rel (0) target = $region13
  $region12: #{softmax_policy_forward.1} parent=0 // pred_region
    _
  $region13: #{softmax_policy_forward.1} parent=0 // pred_fallthru
    _
  // Predicated region
  $region14: #{softmax_policy_forward.1} parent=0 // pred_check
    _
  $region15: #{softmax_policy_forward.1} parent=0 // pred_check_branch
    %19 = sbr.rel (0) target = $region17
  $region16: #{softmax_policy_forward.1} parent=0 // pred_region
    _
  $region17: #{softmax_policy_forward.1} parent=0 // pred_fallthru
    _
  // Predicated region
  $region18: #{softmax_policy_forward.1} parent=0 // pred_check
    _
  $region19: #{softmax_policy_forward.1} parent=0 // pred_check_branch
    %21 = sbr.rel (0) target = $region21
  $region20: #{softmax_policy_forward.1} parent=0 // pred_region
    _
  $region21: #{softmax_policy_forward.1} parent=0 // pred_fallthru
    _
  // Predicated region
  $region22: #{softmax_policy_forward.1} parent=0 // pred_check
    _
  $region23: #{softmax_policy_forward.1} parent=0 // pred_check_branch
    %23 = sbr.rel (0) target = $region25
  $region24: #{softmax_policy_forward.1} parent=0 // pred_region
    _
  $region25: #{softmax_policy_forward.1} parent=0 // pred_fallthru
    _
  // Predicated region
  $region26: #{softmax_policy_forward.1} parent=0 // pred_check
    _
  $region27: #{softmax_policy_forward.1} parent=0 // pred_check_branch
    %25 = sbr.rel (0) target = $region29
  $region28: #{softmax_policy_forward.1} parent=0 // pred_region
    _
  $region29: #{softmax_policy_forward.1} parent=0 // pred_fallthru
    _
  %v27 = vld [vmem:[%s0] sm:$0xf]
  %v28 = vld [vmem:[%s1] sm:$0xf]
  %v29 = vld [vmem:[%s1 + $0x4] sm:$0xf]
  %v30 = vld [vmem:[%s2] sm:$0x1]
  %v32 = vlaneseq
  %v33 = vshrl.u32 %v32, 7
  %v34 = vsub.s32 0, %v33
  %v35 = vrot.slane %v30, %v34
  %v39 = vunpack.c.l.b16 %v28
  %v40 = vunpack.c.l.b16 %v29
  %v41 = vpack.c.b16 %v40, %v39
  %vm43 = vcmask 130048
  %v45 = vsel %vm43, %v27, 0
  %47 = vmatprep.subr.bf16.mxu0 0
  %48 = vmatpush1.bf16.msra.mxu0 0
  %49 = vmatprep.subr.bf16.mxu0 0
  %50 = vmatpush1.bf16.msra.mxu0 0
  %51 = vmatprep.subr.bf16.mxu0 0
  %52 = vmatpush1.bf16.msra.mxu0 0
  %53 = vmatprep.subr.bf16.mxu0 0
  %54 = vmatpush1.bf16.msra.mxu0 0
  %55 = vmatprep.subr.bf16.mxu0 0
  %56 = vmatpush1.bf16.msra.mxu0 0
  %57 = vmatprep.subr.bf16.mxu0 0
  %58 = vmatpush1.bf16.msra.mxu0 0
  %59 = vmatprep.subr.bf16.mxu0 0
  %60 = vmatpush1.bf16.msra.mxu0 0
  %61 = vmatprep.subr.bf16.mxu0 0
  %62 = vmatpush1.bf16.msra.mxu0 %v41
  %63 = vmatprep.subr.bf16.mxu0 0
  %64 = vmatpush2.bf16.msra.mxu0 0
  %65 = vmatprep.subr.bf16.mxu0 0
  %66 = vmatpush2.bf16.msra.mxu0 0
  %67 = vmatprep.subr.bf16.mxu0 0
  %68 = vmatpush2.bf16.msra.mxu0 0
  %69 = vmatprep.subr.bf16.mxu0 0
  %70 = vmatpush2.bf16.msra.mxu0 0
  %71 = vmatprep.subr.bf16.mxu0 0
  %72 = vmatpush2.bf16.msra.mxu0 0
  %73 = vmatprep.subr.bf16.mxu0 0
  %74 = vmatpush2.bf16.msra.mxu0 0
  %75 = vmatprep.subr.bf16.mxu0 0
  %76 = vmatpush2.bf16.msra.mxu0 0
  %77 = vmatprep.subr.bf16.mxu0 0
  %78 = vmatpush2.bf16.msra.mxu0 0
  %79 = vmatprep.mubr.bf16.mxu0 0
  %80 = vmatmul.mubr.bf16.gmra.mxu0 %v45
  %v81 = vpop.f32.mrf.mxu0
  %v82 = vadd.f32 %v35, %v81
  %v83 = vpop.f32.mrf.mxu0
  %v84 = vpop.f32.mrf.mxu0
  %v85 = vpop.f32.mrf.mxu0
  %86 = vdwg.mxu0
  %v87 = vmax.f32 %v82, 0.0
  %v88 = vpack.c.bf16 %v87, %v87
  %v89 = vld [vmem:[%s3] sm:$0xf]
  %v90 = vld [vmem:[%s3 + $0x4] sm:$0xf]
  %v91 = vld [vmem:[%s3 + $0x8] sm:$0xf]
  %v92 = vld [vmem:[%s3 + $0xc] sm:$0xf]
  %v93 = vld [vmem:[%s3 + $0x10] sm:$0xf]
  %v94 = vld [vmem:[%s3 + $0x14] sm:$0xf]
  %v95 = vld [vmem:[%s3 + $0x18] sm:$0xf]
  %v96 = vld [vmem:[%s3 + $0x1c] sm:$0xf]
  %v97 = vld [vmem:[%s3 + $0x20] sm:$0xf]
  %v98 = vld [vmem:[%s3 + $0x24] sm:$0xf]
  %v99 = vld [vmem:[%s3 + $0x28] sm:$0xf]
  %v100 = vld [vmem:[%s3 + $0x2c] sm:$0xf]
  %v101 = vld [vmem:[%s3 + $0x30] sm:$0xf]
  %v102 = vld [vmem:[%s3 + $0x34] sm:$0xf]
  %v103 = vld [vmem:[%s3 + $0x38] sm:$0xf]
  %v104 = vld [vmem:[%s3 + $0x3c] sm:$0xf]
  %v105 = vld [vmem:[%s4] sm:$0x1]
  %v107 = vlaneseq
  %v108 = vshrl.u32 %v107, 7
  %v109 = vsub.s32 0, %v108
  %v110 = vrot.slane %v105, %v109
  %v128 = vunpack.c.l.b16 %v89
  %v129 = vunpack.c.l.b16 %v90
  %v130 = vunpack.c.l.b16 %v91
  %v131 = vunpack.c.l.b16 %v92
  %v132 = vunpack.c.l.b16 %v93
  %v133 = vunpack.c.l.b16 %v94
  %v134 = vunpack.c.l.b16 %v95
  %v135 = vunpack.c.l.b16 %v96
  %v136 = vunpack.c.l.b16 %v97
  %v137 = vunpack.c.l.b16 %v98
  %v138 = vunpack.c.l.b16 %v99
  %v139 = vunpack.c.l.b16 %v100
  %v140 = vunpack.c.l.b16 %v101
  %v141 = vunpack.c.l.b16 %v102
  %v142 = vunpack.c.l.b16 %v103
  %v143 = vunpack.c.l.b16 %v104
  %v144 = vpack.c.b16 %v129, %v128
  %v145 = vpack.c.b16 %v131, %v130
  %v146 = vpack.c.b16 %v133, %v132
  %v147 = vpack.c.b16 %v135, %v134
  %v148 = vpack.c.b16 %v137, %v136
  %v149 = vpack.c.b16 %v139, %v138
  %v150 = vpack.c.b16 %v141, %v140
  %v151 = vpack.c.b16 %v143, %v142
  %160 = vmatprep.subr.bf16.mxu0 0
  %161 = vmatpush1.bf16.msra.mxu0 %v151
  %162 = vmatprep.subr.bf16.mxu0 0
  %163 = vmatpush1.bf16.msra.mxu0 %v150
  %164 = vmatprep.subr.bf16.mxu0 0
  %165 = vmatpush1.bf16.msra.mxu0 %v149
  %166 = vmatprep.subr.bf16.mxu0 0
  %167 = vmatpush1.bf16.msra.mxu0 %v148
  %168 = vmatprep.subr.bf16.mxu0 0
  %169 = vmatpush1.bf16.msra.mxu0 %v147
  %170 = vmatprep.subr.bf16.mxu0 0
  %171 = vmatpush1.bf16.msra.mxu0 %v146
  %172 = vmatprep.subr.bf16.mxu0 0
  %173 = vmatpush1.bf16.msra.mxu0 %v145
  %174 = vmatprep.subr.bf16.mxu0 0
  %175 = vmatpush1.bf16.msra.mxu0 %v144
  %176 = vmatprep.subr.bf16.mxu0 0
  %177 = vmatpush2.bf16.msra.mxu0 0
  %178 = vmatprep.subr.bf16.mxu0 0
  %179 = vmatpush2.bf16.msra.mxu0 0
  %180 = vmatprep.subr.bf16.mxu0 0
  %181 = vmatpush2.bf16.msra.mxu0 0
  %182 = vmatprep.subr.bf16.mxu0 0
  %183 = vmatpush2.bf16.msra.mxu0 0
  %184 = vmatprep.subr.bf16.mxu0 0
  %185 = vmatpush2.bf16.msra.mxu0 0
  %186 = vmatprep.subr.bf16.mxu0 0
  %187 = vmatpush2.bf16.msra.mxu0 0
  %188 = vmatprep.subr.bf16.mxu0 0
  %189 = vmatpush2.bf16.msra.mxu0 0
  %190 = vmatprep.subr.bf16.mxu0 0
  %191 = vmatpush2.bf16.msra.mxu0 0
  %192 = vmatprep.mubr.bf16.mxu0 0
  %193 = vmatmul.mubr.bf16.gmra.mxu0 %v88
  %v194 = vpop.f32.mrf.mxu0
  %v195 = vadd.f32 %v110, %v194
  %v196 = vpop.f32.mrf.mxu0
  %v197 = vpop.f32.mrf.mxu0
  %v198 = vpop.f32.mrf.mxu0
  %199 = vdwg.mxu0
  %v200 = vmax.f32 %v195, 0.0
  %v201 = vpack.c.bf16 %v200, %v200
  %v202 = vld [vmem:[%s5] sm:$0xf]
  %v203 = vld [vmem:[%s5 + $0x4] sm:$0xf]
  %v204 = vld [vmem:[%s5 + $0x8] sm:$0xf]
  %v205 = vld [vmem:[%s5 + $0xc] sm:$0xf]
  %v206 = vld [vmem:[%s5 + $0x10] sm:$0xf]
  %v207 = vld [vmem:[%s5 + $0x14] sm:$0xf]
  %v208 = vld [vmem:[%s5 + $0x18] sm:$0xf]
  %v209 = vld [vmem:[%s5 + $0x1c] sm:$0xf]
  %v210 = vld [vmem:[%s5 + $0x20] sm:$0xf]
  %v211 = vld [vmem:[%s5 + $0x24] sm:$0xf]
  %v212 = vld [vmem:[%s5 + $0x28] sm:$0xf]
  %v213 = vld [vmem:[%s5 + $0x2c] sm:$0xf]
  %v214 = vld [vmem:[%s5 + $0x30] sm:$0xf]
  %v215 = vld [vmem:[%s5 + $0x34] sm:$0xf]
  %v216 = vld [vmem:[%s5 + $0x38] sm:$0xf]
  %v217 = vld [vmem:[%s5 + $0x3c] sm:$0xf]
  %v218 = vld [vmem:[%s6] sm:$0x1]
  %v220 = vlaneseq
  %v221 = vshrl.u32 %v220, 7
  %v222 = vsub.s32 0, %v221
  %v223 = vrot.slane %v218, %v222
  %v241 = vunpack.c.l.b16 %v202
  %v242 = vunpack.c.l.b16 %v203
  %v243 = vunpack.c.l.b16 %v204
  %v244 = vunpack.c.l.b16 %v205
  %v245 = vunpack.c.l.b16 %v206
  %v246 = vunpack.c.l.b16 %v207
  %v247 = vunpack.c.l.b16 %v208
  %v248 = vunpack.c.l.b16 %v209
  %v249 = vunpack.c.l.b16 %v210
  %v250 = vunpack.c.l.b16 %v211
  %v251 = vunpack.c.l.b16 %v212
  %v252 = vunpack.c.l.b16 %v213
  %v253 = vunpack.c.l.b16 %v214
  %v254 = vunpack.c.l.b16 %v215
  %v255 = vunpack.c.l.b16 %v216
  %v256 = vunpack.c.l.b16 %v217
  %v257 = vpack.c.b16 %v242, %v241
  %v258 = vpack.c.b16 %v244, %v243
  %v259 = vpack.c.b16 %v246, %v245
  %v260 = vpack.c.b16 %v248, %v247
  %v261 = vpack.c.b16 %v250, %v249
  %v262 = vpack.c.b16 %v252, %v251
  %v263 = vpack.c.b16 %v254, %v253
  %v264 = vpack.c.b16 %v256, %v255
  %273 = vmatprep.subr.bf16.mxu0 0
  %274 = vmatpush1.bf16.msra.mxu0 %v264
  %275 = vmatprep.subr.bf16.mxu0 0
  %276 = vmatpush1.bf16.msra.mxu0 %v263
  %277 = vmatprep.subr.bf16.mxu0 0
  %278 = vmatpush1.bf16.msra.mxu0 %v262
  %279 = vmatprep.subr.bf16.mxu0 0
  %280 = vmatpush1.bf16.msra.mxu0 %v261
  %281 = vmatprep.subr.bf16.mxu0 0
  %282 = vmatpush1.bf16.msra.mxu0 %v260
  %283 = vmatprep.subr.bf16.mxu0 0
  %284 = vmatpush1.bf16.msra.mxu0 %v259
  %285 = vmatprep.subr.bf16.mxu0 0
  %286 = vmatpush1.bf16.msra.mxu0 %v258
  %287 = vmatprep.subr.bf16.mxu0 0
  %288 = vmatpush1.bf16.msra.mxu0 %v257
  %289 = vmatprep.subr.bf16.mxu0 0
  %290 = vmatpush2.bf16.msra.mxu0 0
  %291 = vmatprep.subr.bf16.mxu0 0
  %292 = vmatpush2.bf16.msra.mxu0 0
  %293 = vmatprep.subr.bf16.mxu0 0
  %294 = vmatpush2.bf16.msra.mxu0 0
  %295 = vmatprep.subr.bf16.mxu0 0
  %296 = vmatpush2.bf16.msra.mxu0 0
  %297 = vmatprep.subr.bf16.mxu0 0
  %298 = vmatpush2.bf16.msra.mxu0 0
  %299 = vmatprep.subr.bf16.mxu0 0
  %300 = vmatpush2.bf16.msra.mxu0 0
  %301 = vmatprep.subr.bf16.mxu0 0
  %302 = vmatpush2.bf16.msra.mxu0 0
  %303 = vmatprep.subr.bf16.mxu0 0
  %304 = vmatpush2.bf16.msra.mxu0 0
  %305 = vmatprep.mubr.bf16.mxu0 0
  %306 = vmatmul.mubr.bf16.gmra.mxu0 %v201
  %v307 = vpop.f32.mrf.mxu0
  %v308 = vadd.f32 %v223, %v307
  %v309 = vpop.f32.mrf.mxu0
  %v310 = vpop.f32.mrf.mxu0
  %v311 = vpop.f32.mrf.mxu0
  %312 = vdwg.mxu0
  %313 = vmax.xlane.f32.xlu0 %v308
  %v314 = vpop.xlane.xlu0 %313
  %v315 = vsub.f32 %v308, %v314
  %v316 = vmul.f32 %v315, 1.442695
  %v317 = vpow.pop %v316
  %318 = vadd.xlane.f32.xlu0 %v317
  %v319 = vpop.xlane.xlu0 %318
  %v320 = vrcp.pop %v319
  %v321 = vmul.f32 %v317, %v320
  %322 = vst [vmem:[%s7] sm:$0xff] %v321
  // Predicated region
  $region30: #{softmax_policy_forward.1} parent=0 // pred_check
    _
  $region31: #{softmax_policy_forward.1} parent=0 // pred_check_branch
    %324 = sbr.rel (0) target = $region33
  $region32: #{softmax_policy_forward.1} parent=0 // pred_region
    _
  $region33: #{softmax_policy_forward.1} parent=0 // pred_fallthru
    _
  // Predicated region
  $region34: #{softmax_policy_forward.1} parent=0 // pred_check
    _
  $region35: #{softmax_policy_forward.1} parent=0 // pred_check_branch
    %326 = sbr.rel (0) target = $region37
  $region36: #{softmax_policy_forward.1} parent=0 // pred_region
    _
  $region37: #{softmax_policy_forward.1} parent=0 // pred_fallthru
    _

</llo_original>
